<compile_context>
chip_gen: v6e
topology: v6e:2x2x1
jax: 0.10.0
libtpu: 0.0.40
codegen_flags: <defaults>
</compile_context>

<pallas_src>
from functools import partial

import jax
import jax.numpy as jnp
from jax import lax
from jax.experimental import pallas as pl
from jax.experimental.pallas import tpu as pltpu


def _round_up(n, m):
    return (n + m - 1) // m * m


def _conv_bn_act_kernel(*refs, k, pad, W, HW_p, act, pointwise):
    """Fused Conv(kxk, stride 1, 'same') + folded BN(+bias) + LeakyReLU(0.1).

    Non-pointwise refs:
      x_ref    : (Cin_p , HW_p)   bf16 input, one image, spatial on lanes
      w_ref    : (Cout_p, k*k*Cin_p) bf16 im2col weights (BN scale folded in)
      mask_ref : (k*k   , HW_p)   f32 per-tap 0/1 zero-padding validity mask
      shift_ref: (Cout_p, 1)      f32 folded BN shift (includes conv bias)
      o_ref    : (Cout_p, HW_p)   f32 output (lane-dense)
      patch_ref: (k*k*Cin_p, HW_p) bf16 VMEM im2col scratch
    Pointwise (1x1) refs: (x_ref, w_ref, shift_ref, o_ref) — no mask/scratch.
    """
    if pointwise:
        x_ref, w_ref, shift_ref, o_ref = refs
        patches = x_ref[...]                           # (Cin_p, HW_p) bf16
    else:
        x_ref, w_ref, mask_ref, shift_ref, o_ref, patch_ref = refs
        x_bf = x_ref[...]                              # (Cin_p, HW_p) bf16
        cin_p = x_bf.shape[0]
        x_f32 = x_bf.astype(jnp.float32)               # single hoisted upcast
        # In-VMEM im2col: per tap, one XLU lane-rotate + one full-width
        # mask-multiply + one full-width tile-aligned bf16 store.  The
        # periodic per-tap mask zeroes row-wrap, cross-image wrap and the
        # lane-pad tail, so no explicit zero stores are needed.
        for dy in range(k):
            for dx in range(k):
                t = dy * k + dx
                s = (dy - pad) * W + (dx - pad)        # static lane shift
                r0, r1 = t * cin_p, (t + 1) * cin_p    # 16-aligned sublanes
                if s == 0:
                    patch_ref[r0:r1, :] = x_bf
                else:
                    rolled = pltpu.roll(x_f32, (HW_p - s) % HW_p, 1)
                    m = mask_ref[t:t + 1, :]           # (1, HW_p) -> bcast
                    patch_ref[r0:r1, :] = (rolled * m).astype(jnp.bfloat16)
        patches = patch_ref[...]

    # Single big-K im2col matmul on the MXU: bf16 inputs, f32 accumulation.
    y = jnp.dot(w_ref[...], patches, preferred_element_type=jnp.float32)

    # Epilogue: folded shift + optional LeakyReLU(0.1).
    y = y + shift_ref[...]
    if act:
        y = jnp.maximum(y, 0.1 * y)
    o_ref[...] = y


def conv_bn_act_pallas(x, w_oihw, b_conv, gamma, beta, mean, var, *,
                       k, pad, act=True, eps=1e-5):
    """Forward pass of Conv(in_ch, out_ch, k, p) = Conv2d + BN + LeakyReLU."""
    B, Cin, H, W = x.shape
    Cout = w_oihw.shape[0]
    assert w_oihw.shape == (Cout, Cin, k, k)
    # stride=1, dilation=1, groups=1, 'same'-size output only.
    assert 2 * pad == k - 1, "only stride-1 'same' convolutions supported"

    HW = H * W
    HW_p = _round_up(HW, 128)        # lane-dense blocks even for odd H*W
    cin_p = _round_up(Cin, 16)       # bf16 packed-sublane tile alignment
    cout_p = _round_up(Cout, 8)
    kk = k * k
    K = kk * cin_p
    pointwise = (kk == 1 and pad == 0)

    # ---- (B, Cin_p, HW_p) bf16: channels on sublanes, spatial on lanes -----
    # No NCHW transpose needed, only zero padding of channels / lane tail.
    x_p = jnp.pad(x.astype(jnp.bfloat16).reshape(B, Cin, HW),
                  ((0, 0), (0, cin_p - Cin), (0, HW_p - HW)))

    # ---- fold conv bias + BN (inference) into scale/shift; scale -> weights
    scale = gamma / jnp.sqrt(var + eps)
    shift = beta + (b_conv - mean) * scale
    shift_p = jnp.zeros((cout_p, 1), jnp.float32).at[:Cout, 0].set(shift)

    w_scaled = w_oihw.astype(jnp.float32) * scale[:, None, None, None]
    w_r = jnp.zeros((cout_p, kk, cin_p), jnp.float32)
    w_r = w_r.at[:Cout, :, :Cin].set(
        jnp.transpose(w_scaled, (0, 2, 3, 1)).reshape(Cout, kk, Cin))
    w_mat = w_r.reshape(cout_p, K).astype(jnp.bfloat16)

    in_specs = [
        pl.BlockSpec((pl.Squeezed(), cin_p, HW_p), lambda b: (b, 0, 0)),
        pl.BlockSpec((cout_p, K), lambda b: (0, 0)),
    ]
    args = [x_p, w_mat]
    scratch_shapes = []
    mask_bytes = scratch_bytes = 0
    if not pointwise:
        # Per-tap zero-padding validity mask (k*k, HW_p): channel-invariant,
        # broadcast across sublanes inside the kernel.
        pos = jnp.arange(HW_p, dtype=jnp.int32)
        rows, cols = pos // W, pos % W
        in_img = pos < HW
        tap_rows = []
        for dy in range(k):
            for dx in range(k):
                oy, ox = dy - pad, dx - pad
                tap_rows.append(in_img
                                & (rows + oy >= 0) & (rows + oy < H)
                                & (cols + ox >= 0) & (cols + ox < W))
        mask = jnp.stack(tap_rows).astype(jnp.float32)          # (kk, HW_p)
        in_specs.append(pl.BlockSpec((kk, HW_p), lambda b: (0, 0)))
        args.append(mask)
        scratch_shapes = [pltpu.VMEM((K, HW_p), jnp.bfloat16)]  # bf16 im2col
        mask_bytes = kk * HW_p * 4
        scratch_bytes = K * HW_p * 2
    in_specs.append(pl.BlockSpec((cout_p, 1), lambda b: (0, 0)))
    args.append(shift_p)

    # ---- VMEM budget from the actual block footprint + headroom ------------
    block_bytes = (2 * cin_p * HW_p * 2            # x, double-buffered, bf16
                   + 2 * cout_p * HW_p * 4         # out, double-buffered, f32
                   + 2 * (cout_p * K * 2 + mask_bytes + cout_p * 4)
                   + scratch_bytes)
    vmem_limit = int(min(max(block_bytes + (4 << 20), 16 << 20), 100 << 20))

    kernel = partial(_conv_bn_act_kernel, k=k, pad=pad, W=W, HW_p=HW_p,
                     act=act, pointwise=pointwise)

    out_p = pl.pallas_call(
        kernel,
        out_shape=jax.ShapeDtypeStruct((B, cout_p, HW_p), jnp.float32),
        grid_spec=pltpu.PrefetchScalarGridSpec(
            num_scalar_prefetch=0,
            grid=(B,),
            in_specs=in_specs,
            out_specs=pl.BlockSpec((pl.Squeezed(), cout_p, HW_p),
                                   lambda b: (b, 0, 0)),
            scratch_shapes=scratch_shapes),
        compiler_params=pltpu.CompilerParams(
            dimension_semantics=("parallel",),
            vmem_limit_bytes=vmem_limit),
    )(*args)

    return out_p[:, :Cout, :HW].reshape(B, Cout, H, W)


def _ref_module(x, w, b_conv, gamma, beta, mean, var, *, pad, eps, act):
    """Pure-JAX reference with the module's unfused f32 math."""
    y = lax.conv_general_dilated(
        x, w, window_strides=(1, 1), padding=((pad, pad), (pad, pad)),
        dimension_numbers=("NCHW", "OIHW", "NCHW"),
        precision=lax.Precision.HIGHEST)
    y = y + b_conv[None, :, None, None]
    y = (y - mean[None, :, None, None]) / jnp.sqrt(var + eps)[None, :, None, None]
    y = y * gamma[None, :, None, None] + beta[None, :, None, None]
    if act:
        y = jnp.maximum(y, 0.1 * y)
    return y


def _ref_quantized(x, w, b_conv, gamma, beta, mean, var, *, pad, eps, act):
    """Reference mirroring the kernel's bf16 rounding + BN-scale weight fold."""
    scale = gamma / jnp.sqrt(var + eps)
    shift = beta + (b_conv - mean) * scale
    w_q = (w.astype(jnp.float32) * scale[:, None, None, None]
           ).astype(jnp.bfloat16).astype(jnp.float32)
    x_q = x.astype(jnp.bfloat16).astype(jnp.float32)
    y = lax.conv_general_dilated(
        x_q, w_q, window_strides=(1, 1), padding=((pad, pad), (pad, pad)),
        dimension_numbers=("NCHW", "OIHW", "NCHW"),
        precision=lax.Precision.HIGHEST)
    y = y + shift[None, :, None, None]
    if act:
        y = jnp.maximum(y, 0.1 * y)
    return y


if __name__ == "__main__":
    eps = 1e-5
    B, cin, H, W = 2, 4, 16, 16
    cout = 8

    root = jax.random.PRNGKey(0)
    kx, k1, k3 = jax.random.split(root, 3)
    x = jax.random.normal(kx, (B, cin, H, W), jnp.float32)

    def make_params(key, ksize):
        ks = jax.random.split(key, 6)
        w = jax.random.normal(ks[0], (cout, cin, ksize, ksize),
                              jnp.float32) * 0.2
        b = jax.random.normal(ks[1], (cout,), jnp.float32) * 0.1
        gamma = jax.random.uniform(ks[2], (cout,), minval=0.5, maxval=1.5)
        beta = jax.random.normal(ks[3], (cout,), jnp.float32) * 0.1
        mean = jax.random.normal(ks[4], (cout,), jnp.float32) * 0.1
        var = jax.random.uniform(ks[5], (cout,), minval=0.5, maxval=1.5)
        return w, b, gamma, beta, mean, var

    # Exercise the module default (k=1, p=0) and the common (k=3, p=1) config.
    for key, (ksize, pad) in [(k1, (1, 0)), (k3, (3, 1))]:
        w, b, gamma, beta, mean, var = make_params(key, ksize)
        out = conv_bn_act_pallas(x, w, b, gamma, beta, mean, var,
                                 k=ksize, pad=pad, act=True, eps=eps)
        out = jax.block_until_ready(out)
        assert out.shape == (B, cout, H, W)

        # Tight check vs. a reference that applies the same scale-fold and
        # bf16 rounding (both accumulate in f32): only ordering noise left.
        ref_q = _ref_quantized(x, w, b, gamma, beta, mean, var,
                               pad=pad, eps=eps, act=True)
        err_q = float(jnp.max(jnp.abs(out - ref_q)))
        assert jnp.allclose(out, ref_q, atol=1e-3, rtol=1e-3), (ksize, err_q)

        # Loose sanity check vs. the module's unfused full-f32 math.
        ref_f = _ref_module(x, w, b, gamma, beta, mean, var,
                            pad=pad, eps=eps, act=True)
        err_f = float(jnp.max(jnp.abs(out - ref_f)))
        assert jnp.allclose(out, ref_f, atol=1e-1, rtol=1e-1), (ksize, err_f)

    print("KERNEL_OK")
</pallas_src>

<mosaic_0001>
module attributes {stable_mosaic.version = 11 : i64} {
  func.func @_conv_bn_act_kernel(%arg0: i32, %arg1: memref<1x16x256xbf16, #tpu.memory_space<vmem>>, %arg2: memref<8x16xbf16, #tpu.memory_space<vmem>>, %arg3: memref<8x1xf32, #tpu.memory_space<vmem>>, %arg4: memref<1x8x256xf32, #tpu.memory_space<vmem>>) attributes {dimension_semantics = [#tpu.dimension_semantics<parallel>], iteration_bounds = array<i64: 2>, scalar_prefetch = 0 : i64, scratch_operands = 0 : i64, tpu.core_type = #tpu.core_type<tc>, window_params = [{transform_indices = @transform_0, window_bounds = array<i64: 1, 16, 256>}, {pipeline_mode = #tpu.pipeline_mode<synchronous>, transform_indices = @transform_1, window_bounds = array<i64: 8, 16>}, {pipeline_mode = #tpu.pipeline_mode<synchronous>, transform_indices = @transform_2, window_bounds = array<i64: 8, 1>}, {transform_indices = @transform_3, window_bounds = array<i64: 1, 8, 256>}]} {
    %c0 = arith.constant 0 : index
    %c0_0 = arith.constant 0 : index
    %c0_1 = arith.constant 0 : index
    %0 = vector.load %arg1[%c0, %c0_0, %c0_1] : memref<1x16x256xbf16, #tpu.memory_space<vmem>>, vector<1x16x256xbf16>
    %1 = vector.shape_cast %0 : vector<1x16x256xbf16> to vector<16x256xbf16>
    %c0_2 = arith.constant 0 : index
    %c0_3 = arith.constant 0 : index
    %2 = vector.load %arg2[%c0_2, %c0_3] : memref<8x16xbf16, #tpu.memory_space<vmem>>, vector<8x16xbf16>
    %cst = arith.constant dense<0.000000e+00> : vector<8x256xf32>
    %3 = tpu.matmul %2, %1, %cst {dimension_numbers = #tpu.dot_dimension_numbers<[1], [0], [0], [1], [0, 0, 1, 1], [], []>} : vector<8x16xbf16>, vector<16x256xbf16>, vector<8x256xf32> -> vector<8x256xf32>
    %c0_4 = arith.constant 0 : index
    %c0_5 = arith.constant 0 : index
    %4 = vector.load %arg3[%c0_4, %c0_5] : memref<8x1xf32, #tpu.memory_space<vmem>>, vector<8x1xf32>
    %5 = vector.broadcast %4 : vector<8x1xf32> to vector<8x256xf32>
    %6 = arith.addf %3, %5 : vector<8x256xf32>
    %cst_6 = arith.constant 1.000000e-01 : f32
    %7 = vector.broadcast %cst_6 : f32 to vector<8x256xf32>
    %8 = arith.mulf %7, %6 : vector<8x256xf32>
    %9 = arith.maximumf %6, %8 : vector<8x256xf32>
    %c0_7 = arith.constant 0 : index
    %c0_8 = arith.constant 0 : index
    %c0_9 = arith.constant 0 : index
    %10 = vector.load %arg4[%c0_7, %c0_8, %c0_9] : memref<1x8x256xf32, #tpu.memory_space<vmem>>, vector<1x8x256xf32>
    %11 = vector.shape_cast %10 : vector<1x8x256xf32> to vector<8x256xf32>
    %12 = vector.shape_cast %9 : vector<8x256xf32> to vector<1x8x256xf32>
    tpu.vector_store %arg4[%c0_7, %c0_8, %c0_9], %12 {strides = array<i32>} : memref<1x8x256xf32, #tpu.memory_space<vmem>>, vector<1x8x256xf32>,
    return
  }
  func.func @transform_0(%arg0: i32) -> (i32, i32, i32) {
    %c0_i32 = arith.constant 0 : i32
    %c0_i32_0 = arith.constant 0 : i32
    %c0_i32_1 = arith.constant 0 : i32
    return %arg0, %c0_i32, %c0_i32_0 : i32, i32, i32
  }
  func.func @transform_1(%arg0: i32) -> (i32, i32) {
    %c0_i32 = arith.constant 0 : i32
    %c0_i32_0 = arith.constant 0 : i32
    %c0_i32_1 = arith.constant 0 : i32
    return %c0_i32, %c0_i32_0 : i32, i32
  }
  func.func @transform_2(%arg0: i32) -> (i32, i32) {
    %c0_i32 = arith.constant 0 : i32
    %c0_i32_0 = arith.constant 0 : i32
    %c0_i32_1 = arith.constant 0 : i32
    return %c0_i32, %c0_i32_0 : i32, i32
  }
  func.func @transform_3(%arg0: i32) -> (i32, i32, i32) {
    %c0_i32 = arith.constant 0 : i32
    %c0_i32_0 = arith.constant 0 : i32
    %c0_i32_1 = arith.constant 0 : i32
    return %arg0, %c0_i32, %c0_i32_0 : i32, i32, i32
  }
}

</mosaic_0001>

<llo_original>
// kernel: tpu_custom_call.1
$region0: #{tpu_custom_call.1}
  #allocation0 [shape = 'u32[]', space=smem, size = 0x4, offset = 0x4, fixed_abs, tag = 'smem constant byte address 0x4 - core index']
  #allocation1 [shape = 'u32[144,128]{1,0:T(1,128)}', space=vmem, size = 0x12000, scoped, tag = 'internal scratch']
  %s0 = inlined_call_operand.hbm [shape: bf16[2,16,256], index: 0, kind: input, shape index: {}]
  %s1 = inlined_call_operand.vmem [shape: bf16[8,16], index: 1, kind: input, shape index: {}]
  %s2 = inlined_call_operand.vmem [shape: f32[8,1], index: 2, kind: input, shape index: {}]
  %s3 = inlined_call_operand.hbm [shape: f32[2,8,256], index: 3, kind: output, shape index: {}]
  %s4 = sld [smem:[#allocation0]]
  $region49: #{tpu_custom_call.1} parent=0
    _
  %s6 = ssub.s32 1, %s4
  %s7 = scalar_select 0, %s6, %s4
  $region1: #{tpu_custom_call.1} parent=0
    #allocation2 [shape = 'u8[16384]{0}', space=vmem, size = 0x4000, scoped, tag = 'input window, operand 0']
    #allocation3 [shape = 's32[2]{0}', space=sflag, size = 0x8, scoped, tag = 'scoped memory for tpu_custom_call.1']
    #allocation4 [shape = 's32[2]{0}', space=sflag, size = 0x8, scoped, tag = 'scoped memory for tpu_custom_call.1']
    #allocation5 [shape = 'u8[16384]{0}', space=vmem, size = 0x4000, scoped, tag = 'output window, operand 0']
    %8 = vsyncpa [#allocation3], 0
    %s9 = scalar_lea.sflag [#allocation3], 1
    %10 = vsyncpa %s9, 0
    %11 = vsyncpa [#allocation4], 0
    %s12 = scalar_lea.sflag [#allocation4], 1
    %13 = vsyncpa %s12, 0
    loop: start=0, step=1, limit=4
    $region2: #{tpu_custom_call.1} parent=1 // loop_pre_header
      _
    $region3: #{tpu_custom_call.1} parent=1 // loop_header
      %s15 = sphi 0, %s19
      %p16 = scmp.ge.s32.totalorder %s15, 4
      %s25 = sphi 0, %s27
      %s28 = sphi 0, %s25
      %s29 = sphi 0, %s28
      %s45 = sphi 0, %s29
      %s49 = sphi 0, %s49
      %s51 = sphi 0, %s49
      %s52 = sphi 0, %s51
      %s66 = sphi 0, %s52
      %s70 = sphi 0, %s70
      %s72 = sphi 0, %s70
      %s73 = sphi 0, %s72
      %s87 = sphi 0, %s73
      %s93 = sphi 0, %s95
      %s96 = sphi 0, %s93
      %s97 = sphi 0, %s96
      %s113 = sphi 0, %s97
    $region4: #{tpu_custom_call.1} parent=1 // loop_header_branch
      %18 = sbr.rel (%p16) target = $region8
    $region5: #{tpu_custom_call.1} parent=1 // loop_body
      %s20 = ssub.s32 %s15, 1
      %s21 = ssub.s32 %s15, 2
      %s22 = sadd.s32 %s15, 1
      %s23 = ssub.s32 %s15, %s22
      %p24 = scmp.eq.s32.totalorder %s23, 0
      %s26 = sadd.s32 %s25, 1
      %s27 = scalar_select %p24, %s25, %s26
      %p30 = pneg %p24
      %p31 = scmp.eq.s32.totalorder %s15, 1
      %p32 = por %p30, %p31
      %p33 = scmp.ne.s32.totalorder %s25, %s28
      %p34 = scmp.eq.s32.totalorder %s15, 0
      %p35 = por %p33, %p34
      %p36 = scmp.ne.s32.totalorder %s25, %s28
      %p37 = scmp.eq.s32.totalorder %s20, 1
      %p38 = por %p36, %p37
      %p39 = scmp.ne.s32.totalorder %s28, %s29
      %p40 = scmp.eq.s32.totalorder %s20, 0
      %p41 = por %p39, %p40
      %p42 = scmp.ne.s32.totalorder %s28, %s29
      %p43 = scmp.eq.s32.totalorder %s21, 1
      %p44 = por %p42, %p43
      %p46 = scmp.ne.s32.totalorder %s29, %s45
      %p47 = scmp.eq.s32.totalorder %s21, 0
      %p48 = por %p46, %p47
      %s50 = sadd.s32 %s49, 1
      %p53 = scmp.eq.s32.totalorder %s15, 1
      %p54 = scmp.ne.s32.totalorder %s49, %s51
      %p55 = scmp.eq.s32.totalorder %s15, 0
      %p56 = por %p54, %p55
      %p57 = scmp.ne.s32.totalorder %s49, %s51
      %p58 = scmp.eq.s32.totalorder %s20, 1
      %p59 = por %p57, %p58
      %p60 = scmp.ne.s32.totalorder %s51, %s52
      %p61 = scmp.eq.s32.totalorder %s20, 0
      %p62 = por %p60, %p61
      %p63 = scmp.ne.s32.totalorder %s51, %s52
      %p64 = scmp.eq.s32.totalorder %s21, 1
      %p65 = por %p63, %p64
      %p67 = scmp.ne.s32.totalorder %s52, %s66
      %p68 = scmp.eq.s32.totalorder %s21, 0
      %p69 = por %p67, %p68
      %s71 = sadd.s32 %s70, 1
      %p74 = scmp.eq.s32.totalorder %s15, 1
      %p75 = scmp.ne.s32.totalorder %s70, %s72
      %p76 = scmp.eq.s32.totalorder %s15, 0
      %p77 = por %p75, %p76
      %p78 = scmp.ne.s32.totalorder %s70, %s72
      %p79 = scmp.eq.s32.totalorder %s20, 1
      %p80 = por %p78, %p79
      %p81 = scmp.ne.s32.totalorder %s72, %s73
      %p82 = scmp.eq.s32.totalorder %s20, 0
      %p83 = por %p81, %p82
      %p84 = scmp.ne.s32.totalorder %s72, %s73
      %p85 = scmp.eq.s32.totalorder %s21, 1
      %p86 = por %p84, %p85
      %p88 = scmp.ne.s32.totalorder %s73, %s87
      %p89 = scmp.eq.s32.totalorder %s21, 0
      %p90 = por %p88, %p89
      %s91 = ssub.s32 %s15, %s22
      %p92 = scmp.eq.s32.totalorder %s91, 0
      %s94 = sadd.s32 %s93, 1
      %s95 = scalar_select %p92, %s93, %s94
      %p98 = pneg %p92
      %p99 = scmp.eq.s32.totalorder %s15, 1
      %p100 = por %p98, %p99
      %p101 = scmp.ne.s32.totalorder %s93, %s96
      %p102 = scmp.eq.s32.totalorder %s15, 0
      %p103 = por %p101, %p102
      %p104 = scmp.ne.s32.totalorder %s93, %s96
      %p105 = scmp.eq.s32.totalorder %s20, 1
      %p106 = por %p104, %p105
      %p107 = scmp.ne.s32.totalorder %s96, %s97
      %p108 = scmp.eq.s32.totalorder %s20, 0
      %p109 = por %p107, %p108
      %p110 = scmp.ne.s32.totalorder %s96, %s97
      %p111 = scmp.eq.s32.totalorder %s21, 1
      %p112 = por %p110, %p111
      %p114 = scmp.ne.s32.totalorder %s97, %s113
      %p115 = scmp.eq.s32.totalorder %s21, 0
      %p116 = por %p114, %p115
      %p117 = scmp.le.s32.totalorder 1, %s15
      %p118 = scmp.lt.s32.totalorder %s15, 3
      %p119 = pnand %p117, %p118
      %p120 = pneg %p119
      // Predicated region
      $region9: #{tpu_custom_call.1} parent=5 // pred_check
        _
      $region10: #{tpu_custom_call.1} parent=5 // pred_check_branch
        %122 = sbr.rel (%p119) target = $region12
      $region11: #{tpu_custom_call.1} parent=5 // pred_region
        %s123 = ssub.s32 %s15, 1
        // Predicated region
        $region13: #{tpu_custom_call.1} parent=11 // pred_check
          %p124 = pneg %p62
        $region14: #{tpu_custom_call.1} parent=11 // pred_check_branch
          %126 = sbr.rel (%p124) target = $region16
        $region15: #{tpu_custom_call.1} parent=11 // pred_region
          _
        $region16: #{tpu_custom_call.1} parent=11 // pred_fallthru
          _
        // Predicated region
        $region17: #{tpu_custom_call.1} parent=11 // pred_check
          %p127 = pneg %p83
        $region18: #{tpu_custom_call.1} parent=11 // pred_check_branch
          %129 = sbr.rel (%p127) target = $region20
        $region19: #{tpu_custom_call.1} parent=11 // pred_region
          _
        $region20: #{tpu_custom_call.1} parent=11 // pred_fallthru
          _
      $region12: #{tpu_custom_call.1} parent=5 // pred_fallthru
        _
      %p130 = scmp.lt.s32.totalorder %s15, 2
      // Predicated region
      $region21: #{tpu_custom_call.1} parent=5 // pred_check
        %p131 = pneg %p130
      $region22: #{tpu_custom_call.1} parent=5 // pred_check_branch
        %133 = sbr.rel (%p131) target = $region24
      $region23: #{tpu_custom_call.1} parent=5 // pred_region
        // Predicated region
        $region25: #{tpu_custom_call.1} parent=23 // pred_check
          %p134 = pneg %p35
        $region26: #{tpu_custom_call.1} parent=23 // pred_check_branch
          %136 = sbr.rel (%p134) target = $region28
        $region27: #{tpu_custom_call.1} parent=23 // pred_region
          %s137 = sand.u32 %s25, 1
          %s138 = scalar_lea.sflag [#allocation3], %s137
          %s139 = sand.u32 %s25, 1
          %s140 = smul.addr %s139, 16
          %s141 = scalar_lea.vmem [#allocation2], %s140
          %s143 = ssub.s32 256, 256
          %144 = vsyncadd %s138, %s143
          %s145 = smul.addr %s15, 4
          %s146 = smul.addr %s145, 64
          %s147 = scalar_lea.hbm %s0, %s146
          %s148 = sshll.u32 %s141, 4
          %s149 = int_to_ptr.vmem [resolvable:$true] %s148
          %154 = dma.hbm_to_vmem [thread:$0]  %s147, 256, %s149, %s138, 128, 128, 8
        $region28: #{tpu_custom_call.1} parent=23 // pred_fallthru
          _
      $region24: #{tpu_custom_call.1} parent=5 // pred_fallthru
        _
      %p155 = scmp.le.s32.totalorder 1, %s15
      %p156 = scmp.lt.s32.totalorder %s15, 3
      %p157 = pnand %p155, %p156
      %p158 = pneg %p157
      // Predicated region
      $region29: #{tpu_custom_call.1} parent=5 // pred_check
        _
      $region30: #{tpu_custom_call.1} parent=5 // pred_check_branch
        %160 = sbr.rel (%p157) target = $region32
      $region31: #{tpu_custom_call.1} parent=5 // pred_region
        %s161 = ssub.s32 %s15, 1
        %s162 = sand.u32 %s28, 1
        %s163 = scalar_lea.sflag [#allocation3], %s162
        %s164 = sand.u32 %s28, 1
        %s165 = smul.addr %s164, 16
        %s166 = scalar_lea.vmem [#allocation2], %s165
        // Predicated region
        $region33: #{tpu_custom_call.1} parent=31 // pred_check
          %p167 = pneg %p41
        $region34: #{tpu_custom_call.1} parent=31 // pred_check_branch
          %169 = sbr.rel (%p167) target = $region36
        $region35: #{tpu_custom_call.1} parent=31 // pred_region
          %170 = dma.done %s163, 256
        $region36: #{tpu_custom_call.1} parent=31 // pred_fallthru
          _
        %s171 = sand.u32 %s28, 1
        %s172 = scalar_lea.sflag [#allocation3], %s171
        %s173 = sand.u32 %s28, 1
        %s174 = smul.addr %s173, 16
        %s175 = scalar_lea.vmem [#allocation2], %s174
        %p176 = pneg %p41
        %p177 = pneg %p38
        %p178 = pneg %p62
        %p179 = pneg %p59
        %p180 = pneg %p83
        %p181 = pneg %p80
        %p182 = pneg %p109
        %p183 = pneg %p106
        %s184 = sand.u32 %s96, 1
        %s185 = scalar_lea.sflag [#allocation4], %s184
        %s186 = sand.u32 %s96, 1
        %s187 = smul.addr %s186, 16
        %s188 = scalar_lea.vmem [#allocation5], %s187
        %v190 = vld [vmem:[%s166] sm:$0xff]
        %v191 = vld [vmem:[%s166 + $0x8] sm:$0xff]
        %v192 = vld [vmem:[%s1] sm:$0xf]
        %v193 = vld [vmem:[%s2] sm:$0xff]
        %195 = vset.pattern.permute.xlu0 0
        %196 = vperm.xlu0 %195, %v193
        %v197 = vpop.permute.xlu0 %196
        %v201 = vunpack.c.l.b16 %v190
        %v202 = vunpack.c.h.b16 %v190
        %v203 = vunpack.c.l.b16 %v191
        %v204 = vunpack.c.h.b16 %v191
        %v205 = vpack.c.b16 %v203, %v201
        %v206 = vpack.c.b16 %v204, %v202
        %vm209 = vcmask 130048
        %v211 = vsel %vm209, %v192, 0
        %213 = vmatprep.subr.bf16.mxu0 0
        %214 = vmatpush1.bf16.msra.mxu0 0
        %215 = vmatprep.subr.bf16.mxu0 0
        %216 = vmatpush1.bf16.msra.mxu0 0
        %217 = vmatprep.subr.bf16.mxu0 0
        %218 = vmatpush1.bf16.msra.mxu0 0
        %219 = vmatprep.subr.bf16.mxu0 0
        %220 = vmatpush1.bf16.msra.mxu0 0
        %221 = vmatprep.subr.bf16.mxu0 0
        %222 = vmatpush1.bf16.msra.mxu0 0
        %223 = vmatprep.subr.bf16.mxu0 0
        %224 = vmatpush1.bf16.msra.mxu0 0
        %225 = vmatprep.subr.bf16.mxu0 0
        %226 = vmatpush1.bf16.msra.mxu0 0
        %227 = vmatprep.subr.bf16.mxu0 %v206
        %228 = vmatpush1.bf16.msra.mxu0 %v205
        %229 = vmatprep.subr.bf16.mxu0 0
        %230 = vmatpush2.bf16.msra.mxu0 0
        %231 = vmatprep.subr.bf16.mxu0 0
        %232 = vmatpush2.bf16.msra.mxu0 0
        %233 = vmatprep.subr.bf16.mxu0 0
        %234 = vmatpush2.bf16.msra.mxu0 0
        %235 = vmatprep.subr.bf16.mxu0 0
        %236 = vmatpush2.bf16.msra.mxu0 0
        %237 = vmatprep.subr.bf16.mxu0 0
        %238 = vmatpush2.bf16.msra.mxu0 0
        %239 = vmatprep.subr.bf16.mxu0 0
        %240 = vmatpush2.bf16.msra.mxu0 0
        %241 = vmatprep.subr.bf16.mxu0 0
        %242 = vmatpush2.bf16.msra.mxu0 0
        %243 = vmatprep.subr.bf16.mxu0 0
        %244 = vmatpush2.bf16.msra.mxu0 0
        %245 = vmatprep.mubr.bf16.mxu0 0
        %246 = vmatmul.mubr.bf16.gmra.mxu0 %v211
        %v247 = vpop.f32.mrf.mxu0
        %v248 = vadd.f32 %v197, %v247
        %v249 = vpop.f32.mrf.mxu0
        %v250 = vadd.f32 %v197, %v249
        %v251 = vpop.f32.mrf.mxu0
        %v252 = vpop.f32.mrf.mxu0
        %253 = vdwg.mxu0
        %v254 = vmul.f32 %v248, 0.1
        %v255 = vmul.f32 %v250, 0.1
        %v256 = vmax.f32 %v248, %v254
        %v257 = vmax.f32 %v250, %v255
        %258 = vst [vmem:[%s188] sm:$0xff] %v256
        %259 = vst [vmem:[%s188 + $0x8] sm:$0xff] %v257
        %s260 = sand.u32 %s96, 1
        %s261 = scalar_lea.sflag [#allocation4], %s260
        %s262 = sand.u32 %s96, 1
        %s263 = smul.addr %s262, 16
        %s264 = scalar_lea.vmem [#allocation5], %s263
        // Predicated region
        $region37: #{tpu_custom_call.1} parent=31 // pred_check
          %p265 = pneg %p106
        $region38: #{tpu_custom_call.1} parent=31 // pred_check_branch
          %267 = sbr.rel (%p265) target = $region40
        $region39: #{tpu_custom_call.1} parent=31 // pred_region
          %s269 = ssub.s32 256, 256
          %270 = vsyncadd %s261, %s269
          %s271 = smul.addr %s20, 2
          %s272 = smul.addr %s271, 128
          %s273 = scalar_lea.hbm %s3, %s272
          %s275 = sshll.u32 %s264, 4
          %s276 = int_to_ptr.vmem [resolvable:$true] %s275
          %278 = dma.vmem_to_hbm [thread:$0]  %s276, 256, %s273, %s261
        $region40: #{tpu_custom_call.1} parent=31 // pred_fallthru
          _
      $region32: #{tpu_custom_call.1} parent=5 // pred_fallthru
        _
      %p279 = scmp.le.s32.totalorder 2, %s15
      // Predicated region
      $region41: #{tpu_custom_call.1} parent=5 // pred_check
        %p280 = pneg %p279
      $region42: #{tpu_custom_call.1} parent=5 // pred_check_branch
        %282 = sbr.rel (%p280) target = $region44
      $region43: #{tpu_custom_call.1} parent=5 // pred_region
        %s283 = ssub.s32 %s15, 2
        // Predicated region
        $region45: #{tpu_custom_call.1} parent=43 // pred_check
          %p284 = pneg %p112
        $region46: #{tpu_custom_call.1} parent=43 // pred_check_branch
          %286 = sbr.rel (%p284) target = $region48
        $region47: #{tpu_custom_call.1} parent=43 // pred_region
          %s287 = sand.u32 %s97, 1
          %s288 = scalar_lea.sflag [#allocation4], %s287
          %s289 = sand.u32 %s97, 1
          %s290 = smul.addr %s289, 16
          %s291 = scalar_lea.vmem [#allocation5], %s290
          %292 = dma.done %s288, 256
        $region48: #{tpu_custom_call.1} parent=43 // pred_fallthru
          _
      $region44: #{tpu_custom_call.1} parent=5 // pred_fallthru
        _
    $region6: #{tpu_custom_call.1} parent=1 // loop_footer
      %s19 = sadd.s32 1, %s15
    $region7: #{tpu_custom_call.1} parent=1 // loop_footer_branch
      %14 = sbr.rel target = $region3
    $region8: #{tpu_custom_call.1} parent=1 // loop_exit
      _
    %293 = vsyncpa [#allocation3], 1
    %s294 = scalar_lea.sflag [#allocation3], 1
    %295 = vsyncpa %s294, 1
    %296 = vsyncpa [#allocation4], 1
    %s297 = scalar_lea.sflag [#allocation4], 1
    %298 = vsyncpa %s297, 1

</llo_original>
